<compile_context>
chip_gen: v7x
topology: tpu7x:2x2x1
jax: 0.10.0
libtpu: 0.0.40
codegen_flags: <defaults>
</compile_context>

<pallas_src>
import jax
import jax.numpy as jnp
from jax.experimental import pallas as pl
from jax.experimental.pallas import tpu as pltpu


def cnn_kernel(lhs_ref, w_ref, cb_ref, fcw_ref, fcb_ref, o_ref):
    """Single grid step handles the whole batch.

    lhs_ref : (B*Lout, K*C)  im2col'd input (column index = k*C + c)
    w_ref   : (K*C, M)       conv weight, rows ordered to match lhs columns
    cb_ref  : (1, M)         conv bias
    fcw_ref : (M, N)         fc weight (pre-transposed)
    fcb_ref : (1, N)         fc bias
    o_ref   : (B, N)         logits for the whole batch (one store)
    """
    BL = lhs_ref.shape[0]
    B, N = o_ref.shape
    M = w_ref.shape[1]
    Lout = BL // B

    # Conv1d for every (batch, time) position in ONE matmul: contraction = K*C.
    conv = jnp.dot(lhs_ref[...], w_ref[...],
                   preferred_element_type=jnp.float32)        # (B*Lout, M)

    # AdaptiveMaxPool1d(1): per-batch max over the Lout rows belonging to it.
    # Use an iota row-mask (static unroll over B) -> no unaligned slices/reshapes.
    row_id = jax.lax.broadcasted_iota(jnp.int32, (BL, M), 0)
    pooled_rows = []
    for b in range(B):                                         # static unroll, B tiny
        in_b = jnp.logical_and(row_id >= b * Lout, row_id < (b + 1) * Lout)
        masked = jnp.where(in_b, conv, -jnp.inf)
        pooled_rows.append(jnp.max(masked, axis=0, keepdims=True))
    pooled = jnp.concatenate(pooled_rows, axis=0)              # (B, M)

    # Bias + ReLU after the pool (equivalent to ReLU-then-max of conv+bias).
    hidden = jnp.maximum(pooled + cb_ref[...], 0.0)            # (B, M)

    # Linear: one (B, M) @ (M, N) matmul, one (B, N) store.
    out = jnp.dot(hidden, fcw_ref[...],
                  preferred_element_type=jnp.float32) + fcb_ref[...]
    o_ref[...] = out.astype(o_ref.dtype)


def cnn_forward(x_ncl, conv_w, conv_b, fc_w, fc_b):
    """x_ncl: (B, C, L) float32 (PyTorch NCL). Returns (B, n_class) logits."""
    B, C, L = x_ncl.shape
    M, _, K = conv_w.shape
    N = fc_w.shape[0]
    Lout = L - K + 1

    # Layout plumbing (glue) in plain JAX — keeps the kernel pure 2-D matmuls.
    x_t = jnp.transpose(x_ncl, (0, 2, 1))                      # (B, L, C)
    # im2col: column index = k*C + c
    lhs = jnp.concatenate([x_t[:, k:k + Lout, :] for k in range(K)], axis=-1)
    lhs = lhs.reshape(B * Lout, K * C)                         # (B*Lout, K*C)
    w2 = jnp.transpose(conv_w, (2, 1, 0)).reshape(K * C, M)    # (K*C, M)
    fcw = jnp.transpose(fc_w, (1, 0))                          # (M, N)
    cb = conv_b.reshape(1, M)
    fcb = fc_b.reshape(1, N)

    return pl.pallas_call(
        cnn_kernel,
        out_shape=jax.ShapeDtypeStruct((B, N), jnp.float32),
        grid=(1,),                                             # single grid step
        in_specs=[
            pl.BlockSpec((B * Lout, K * C), lambda i: (0, 0)),  # full im2col slab
            pl.BlockSpec((K * C, M), lambda i: (0, 0)),         # full conv weight
            pl.BlockSpec((1, M), lambda i: (0, 0)),             # conv bias
            pl.BlockSpec((M, N), lambda i: (0, 0)),             # fc weight
            pl.BlockSpec((1, N), lambda i: (0, 0)),             # fc bias
        ],
        out_specs=pl.BlockSpec((B, N), lambda i: (0, 0)),
        compiler_params=pltpu.CompilerParams(
            dimension_semantics=("arbitrary",)),
    )(lhs, w2, cb, fcw, fcb)


def cnn_reference(x_ncl, conv_w, conv_b, fc_w, fc_b):
    """Pure-JAX reference mirroring the PyTorch forward order
    (conv -> bias -> ReLU -> max-pool -> fc), to guard the bias/ReLU-after-pool refactor."""
    B, C, L = x_ncl.shape
    M, _, K = conv_w.shape
    Lout = L - K + 1
    conv = jnp.zeros((B, M, Lout), jnp.float32)
    for k in range(K):
        conv = conv + jnp.einsum('bcl,mc->bml',
                                 x_ncl[:, :, k:k + Lout], conv_w[:, :, k])
    conv = conv + conv_b[None, :, None]
    conv = jnp.maximum(conv, 0.0)
    pooled = jnp.max(conv, axis=-1)                            # (B, M)
    return pooled @ fc_w.T + fc_b


if __name__ == "__main__":
    # Shapes implied by the module: batch=2, in_features=4, seq_len=16,
    # mid_features=32, n_class=8, conv kernel=3.
    B, C, L = 2, 4, 16
    M, N, K = 32, 8, 3

    key = jax.random.PRNGKey(0)
    kx, kcw, kcb, kfw, kfb = jax.random.split(key, 5)

    x = jax.random.normal(kx, (B, C, L), dtype=jnp.float32)
    conv_w = 0.1 * jax.random.normal(kcw, (M, C, K), dtype=jnp.float32)
    conv_b = 0.1 * jax.random.normal(kcb, (M,), dtype=jnp.float32)
    fc_w = 0.1 * jax.random.normal(kfw, (N, M), dtype=jnp.float32)
    fc_b = 0.1 * jax.random.normal(kfb, (N,), dtype=jnp.float32)

    out = cnn_forward(x, conv_w, conv_b, fc_w, fc_b)
    out = jax.block_until_ready(out)

    ref = cnn_reference(x, conv_w, conv_b, fc_w, fc_b)
    assert out.shape == (B, N), out.shape
    assert jnp.allclose(out, ref, atol=1e-4, rtol=1e-4), (out, ref)

    print("KERNEL_OK")
</pallas_src>

<mosaic_0001>
module attributes {stable_mosaic.version = 11 : i64} {
  func.func @cnn_kernel(%arg0: i32, %arg1: memref<28x12xf32, #tpu.memory_space<vmem>>, %arg2: memref<12x32xf32, #tpu.memory_space<vmem>>, %arg3: memref<1x32xf32, #tpu.memory_space<vmem>>, %arg4: memref<32x8xf32, #tpu.memory_space<vmem>>, %arg5: memref<1x8xf32, #tpu.memory_space<vmem>>, %arg6: memref<2x8xf32, #tpu.memory_space<vmem>>) attributes {dimension_semantics = [#tpu.dimension_semantics<arbitrary>], iteration_bounds = array<i64: 1>, scalar_prefetch = 0 : i64, scratch_operands = 0 : i64, tpu.core_type = #tpu.core_type<tc>, window_params = [{pipeline_mode = #tpu.pipeline_mode<synchronous>, transform_indices = @transform_0, window_bounds = array<i64: 28, 12>}, {pipeline_mode = #tpu.pipeline_mode<synchronous>, transform_indices = @transform_1, window_bounds = array<i64: 12, 32>}, {pipeline_mode = #tpu.pipeline_mode<synchronous>, transform_indices = @transform_2, window_bounds = array<i64: 1, 32>}, {pipeline_mode = #tpu.pipeline_mode<synchronous>, transform_indices = @transform_3, window_bounds = array<i64: 32, 8>}, {pipeline_mode = #tpu.pipeline_mode<synchronous>, transform_indices = @transform_4, window_bounds = array<i64: 1, 8>}, {pipeline_mode = #tpu.pipeline_mode<synchronous>, transform_indices = @transform_5, window_bounds = array<i64: 2, 8>}]} {
    %c0 = arith.constant 0 : index
    %c0_0 = arith.constant 0 : index
    %0 = vector.load %arg1[%c0, %c0_0] : memref<28x12xf32, #tpu.memory_space<vmem>>, vector<28x12xf32>
    %c0_1 = arith.constant 0 : index
    %c0_2 = arith.constant 0 : index
    %1 = vector.load %arg2[%c0_1, %c0_2] : memref<12x32xf32, #tpu.memory_space<vmem>>, vector<12x32xf32>
    %cst = arith.constant dense<0.000000e+00> : vector<28x32xf32>
    %2 = tpu.matmul %0, %1, %cst {dimension_numbers = #tpu.dot_dimension_numbers<[1], [0], [0], [1], [0, 0, 1, 1], [], []>} : vector<28x12xf32>, vector<12x32xf32>, vector<28x32xf32> -> vector<28x32xf32>
    %3 = tpu.iota {dimensions = array<i32: 0>} : vector<28x32xi32>
    %c0_i32 = arith.constant 0 : i32
    %4 = vector.broadcast %c0_i32 : i32 to vector<28x32xi32>
    %5 = arith.cmpi sge, %3, %4 : vector<28x32xi32>
    %c14_i32 = arith.constant 14 : i32
    %6 = vector.broadcast %c14_i32 : i32 to vector<28x32xi32>
    %7 = arith.cmpi slt, %3, %6 : vector<28x32xi32>
    %8 = arith.andi %5, %7 : vector<28x32xi1>
    %cst_3 = arith.constant 0xFF800000 : f32
    %9 = vector.broadcast %cst_3 : f32 to vector<28x32xf32>
    %10 = arith.select %8, %2, %9 : vector<28x32xi1>, vector<28x32xf32>
    %cst_4 = arith.constant dense<0xFF800000> : vector<32xf32>
    %11 = vector.multi_reduction <maximumf>, %10, %cst_4 [0] : vector<28x32xf32> to vector<32xf32>
    %12 = vector.shape_cast %11 : vector<32xf32> to vector<1x32xf32>
    %c14_i32_5 = arith.constant 14 : i32
    %13 = vector.broadcast %c14_i32_5 : i32 to vector<28x32xi32>
    %14 = arith.cmpi sge, %3, %13 : vector<28x32xi32>
    %c28_i32 = arith.constant 28 : i32
    %15 = vector.broadcast %c28_i32 : i32 to vector<28x32xi32>
    %16 = arith.cmpi slt, %3, %15 : vector<28x32xi32>
    %17 = arith.andi %14, %16 : vector<28x32xi1>
    %cst_6 = arith.constant 0xFF800000 : f32
    %18 = vector.broadcast %cst_6 : f32 to vector<28x32xf32>
    %19 = arith.select %17, %2, %18 : vector<28x32xi1>, vector<28x32xf32>
    %cst_7 = arith.constant dense<0xFF800000> : vector<32xf32>
    %20 = vector.multi_reduction <maximumf>, %19, %cst_7 [0] : vector<28x32xf32> to vector<32xf32>
    %21 = vector.shape_cast %20 : vector<32xf32> to vector<1x32xf32>
    %22 = tpu.concatenate %12, %21 in 0 : vector<1x32xf32>, vector<1x32xf32> -> vector<2x32xf32>
    %c0_8 = arith.constant 0 : index
    %c0_9 = arith.constant 0 : index
    %23 = vector.load %arg3[%c0_8, %c0_9] : memref<1x32xf32, #tpu.memory_space<vmem>>, vector<1x32xf32>
    %24 = vector.broadcast %23 : vector<1x32xf32> to vector<2x32xf32>
    %25 = arith.addf %22, %24 : vector<2x32xf32>
    %cst_10 = arith.constant 0.000000e+00 : f32
    %26 = vector.broadcast %cst_10 : f32 to vector<2x32xf32>
    %27 = arith.maximumf %25, %26 : vector<2x32xf32>
    %c0_11 = arith.constant 0 : index
    %c0_12 = arith.constant 0 : index
    %28 = vector.load %arg4[%c0_11, %c0_12] : memref<32x8xf32, #tpu.memory_space<vmem>>, vector<32x8xf32>
    %cst_13 = arith.constant dense<0.000000e+00> : vector<2x8xf32>
    %29 = tpu.matmul %27, %28, %cst_13 {dimension_numbers = #tpu.dot_dimension_numbers<[1], [0], [0], [1], [0, 0, 1, 1], [], []>} : vector<2x32xf32>, vector<32x8xf32>, vector<2x8xf32> -> vector<2x8xf32>
    %c0_14 = arith.constant 0 : index
    %c0_15 = arith.constant 0 : index
    %30 = vector.load %arg5[%c0_14, %c0_15] : memref<1x8xf32, #tpu.memory_space<vmem>>, vector<1x8xf32>
    %31 = vector.broadcast %30 : vector<1x8xf32> to vector<2x8xf32>
    %32 = arith.addf %29, %31 : vector<2x8xf32>
    %c0_16 = arith.constant 0 : index
    %c0_17 = arith.constant 0 : index
    %33 = vector.load %arg6[%c0_16, %c0_17] : memref<2x8xf32, #tpu.memory_space<vmem>>, vector<2x8xf32>
    tpu.vector_store %arg6[%c0_16, %c0_17], %32 {strides = array<i32>} : memref<2x8xf32, #tpu.memory_space<vmem>>, vector<2x8xf32>,
    return
  }
  func.func @transform_0(%arg0: i32) -> (i32, i32) {
    %c0_i32 = arith.constant 0 : i32
    %c0_i32_0 = arith.constant 0 : i32
    %c0_i32_1 = arith.constant 0 : i32
    return %c0_i32, %c0_i32_0 : i32, i32
  }
  func.func @transform_1(%arg0: i32) -> (i32, i32) {
    %c0_i32 = arith.constant 0 : i32
    %c0_i32_0 = arith.constant 0 : i32
    %c0_i32_1 = arith.constant 0 : i32
    return %c0_i32, %c0_i32_0 : i32, i32
  }
  func.func @transform_2(%arg0: i32) -> (i32, i32) {
    %c0_i32 = arith.constant 0 : i32
    %c0_i32_0 = arith.constant 0 : i32
    %c0_i32_1 = arith.constant 0 : i32
    return %c0_i32, %c0_i32_0 : i32, i32
  }
  func.func @transform_3(%arg0: i32) -> (i32, i32) {
    %c0_i32 = arith.constant 0 : i32
    %c0_i32_0 = arith.constant 0 : i32
    %c0_i32_1 = arith.constant 0 : i32
    return %c0_i32, %c0_i32_0 : i32, i32
  }
  func.func @transform_4(%arg0: i32) -> (i32, i32) {
    %c0_i32 = arith.constant 0 : i32
    %c0_i32_0 = arith.constant 0 : i32
    %c0_i32_1 = arith.constant 0 : i32
    return %c0_i32, %c0_i32_0 : i32, i32
  }
  func.func @transform_5(%arg0: i32) -> (i32, i32) {
    %c0_i32 = arith.constant 0 : i32
    %c0_i32_0 = arith.constant 0 : i32
    %c0_i32_1 = arith.constant 0 : i32
    return %c0_i32, %c0_i32_0 : i32, i32
  }
}

</mosaic_0001>

<llo_original>
// kernel: tpu_custom_call.1
$region0: #{tpu_custom_call.1}
  #allocation0 [shape = 'u32[]', space=smem, size = 0x4, offset = 0x4, fixed_abs, tag = 'smem constant byte address 0x4 - core index']
  #allocation1 [shape = 'u32[144,128]{1,0:T(1,128)}', space=vmem, size = 0x12000, scoped, tag = 'internal scratch']
  %s0 = inlined_call_operand.vmem [shape: f32[28,12], index: 0, kind: input, shape index: {}]
  %s1 = inlined_call_operand.vmem [shape: f32[12,32], index: 1, kind: input, shape index: {}]
  %s2 = inlined_call_operand.vmem [shape: f32[1,32], index: 2, kind: input, shape index: {}]
  %s3 = inlined_call_operand.vmem [shape: f32[32,8], index: 3, kind: input, shape index: {}]
  %s4 = inlined_call_operand.vmem [shape: f32[1,8], index: 4, kind: input, shape index: {}]
  %s5 = inlined_call_operand.hbm [shape: f32[2,8], index: 5, kind: output, shape index: {}]
  %s6 = sld [smem:[#allocation0]]
  $region30: #{tpu_custom_call.1} parent=0
    _
  %s8 = ssub.s32 1, %s6
  %s9 = scalar_select 0, %s8, %s6
  $region1: #{tpu_custom_call.1} parent=0
    #allocation2 [shape = 'u8[1024]{0}', space=vmem, size = 0x400, scoped, tag = 'output window, operand 0, single buffered']
    #allocation3 [shape = 's32[1]{0}', space=sflag, size = 0x4, scoped, tag = 'scoped memory for tpu_custom_call.1']
    %10 = vsyncpa [#allocation3], 0
    // Predicated region
    $region2: #{tpu_custom_call.1} parent=1 // pred_check
      _
    $region3: #{tpu_custom_call.1} parent=1 // pred_check_branch
      %12 = sbr.rel (0) target = $region5
    $region4: #{tpu_custom_call.1} parent=1 // pred_region
      _
    $region5: #{tpu_custom_call.1} parent=1 // pred_fallthru
      _
    // Predicated region
    $region6: #{tpu_custom_call.1} parent=1 // pred_check
      _
    $region7: #{tpu_custom_call.1} parent=1 // pred_check_branch
      %14 = sbr.rel (0) target = $region9
    $region8: #{tpu_custom_call.1} parent=1 // pred_region
      _
    $region9: #{tpu_custom_call.1} parent=1 // pred_fallthru
      _
    // Predicated region
    $region10: #{tpu_custom_call.1} parent=1 // pred_check
      _
    $region11: #{tpu_custom_call.1} parent=1 // pred_check_branch
      %16 = sbr.rel (0) target = $region13
    $region12: #{tpu_custom_call.1} parent=1 // pred_region
      _
    $region13: #{tpu_custom_call.1} parent=1 // pred_fallthru
      _
    // Predicated region
    $region14: #{tpu_custom_call.1} parent=1 // pred_check
      _
    $region15: #{tpu_custom_call.1} parent=1 // pred_check_branch
      %18 = sbr.rel (0) target = $region17
    $region16: #{tpu_custom_call.1} parent=1 // pred_region
      _
    $region17: #{tpu_custom_call.1} parent=1 // pred_fallthru
      _
    // Predicated region
    $region18: #{tpu_custom_call.1} parent=1 // pred_check
      _
    $region19: #{tpu_custom_call.1} parent=1 // pred_check_branch
      %20 = sbr.rel (0) target = $region21
    $region20: #{tpu_custom_call.1} parent=1 // pred_region
      _
    $region21: #{tpu_custom_call.1} parent=1 // pred_fallthru
      _
    %v21 = vld [vmem:[%s0] sm:$0xff]
    %v22 = vld [vmem:[%s0 + $0x8] sm:$0xff]
    %v23 = vld [vmem:[%s0 + $0x10] sm:$0xff]
    %v24 = vld [vmem:[%s0 + $0x18] sm:$0xf]
    %v25 = vld [vmem:[%s1] sm:$0xff]
    %v26 = vld [vmem:[%s1 + $0x8] sm:$0xf]
    %vm27 = vcmask 97280
    %v29 = vsel %vm27, %v21, 0
    %v32 = vsel %vm27, %v22, 0
    %v35 = vsel %vm27, %v23, 0
    %v38 = vsel %vm27, %v24, 0
    %vm40 = vcmask 1043456
    %v42 = vsel %vm40, %v26, 0
    %44 = vmatprep.subr.mxu0 0.0
    %45 = vmatpush1.msra.mxu0 %v25
    %46 = vmatprep.subr.mxu0 0.0
    %47 = vmatpush1.msra.mxu0 %v42
    %48 = vmatprep.subr.mxu0 0.0
    %49 = vmatpush1.msra.mxu0 0.0
    %50 = vmatprep.subr.mxu0 0.0
    %51 = vmatpush1.msra.mxu0 0.0
    %52 = vmatprep.subr.mxu0 0.0
    %53 = vmatpush1.msra.mxu0 0.0
    %54 = vmatprep.subr.mxu0 0.0
    %55 = vmatpush1.msra.mxu0 0.0
    %56 = vmatprep.subr.mxu0 0.0
    %57 = vmatpush1.msra.mxu0 0.0
    %58 = vmatprep.subr.mxu0 0.0
    %59 = vmatpush1.msra.mxu0 0.0
    %60 = vmatprep.subr.mxu0 0.0
    %61 = vmatpush1.msra.mxu0 0.0
    %62 = vmatprep.subr.mxu0 0.0
    %63 = vmatpush1.msra.mxu0 0.0
    %64 = vmatprep.subr.mxu0 0.0
    %65 = vmatpush1.msra.mxu0 0.0
    %66 = vmatprep.subr.mxu0 0.0
    %67 = vmatpush1.msra.mxu0 0.0
    %68 = vmatprep.subr.mxu0 0.0
    %69 = vmatpush1.msra.mxu0 0.0
    %70 = vmatprep.subr.mxu0 0.0
    %71 = vmatpush1.msra.mxu0 0.0
    %72 = vmatprep.subr.mxu0 0.0
    %73 = vmatpush1.msra.mxu0 0.0
    %74 = vmatprep.subr.mxu0 0.0
    %75 = vmatpush1.msra.mxu0 0.0
    %76 = vmatprep.subr.mxu0 0.0
    %77 = vmatpush1.msra.mxu0 0.0
    %78 = vmatprep.subr.mxu0 0.0
    %79 = vmatpush1.msra.mxu0 0.0
    %80 = vmatprep.subr.mxu0 0.0
    %81 = vmatpush1.msra.mxu0 0.0
    %82 = vmatprep.subr.mxu0 0.0
    %83 = vmatpush1.msra.mxu0 0.0
    %84 = vmatprep.subr.mxu0 0.0
    %85 = vmatpush1.msra.mxu0 0.0
    %86 = vmatprep.subr.mxu0 0.0
    %87 = vmatpush1.msra.mxu0 0.0
    %88 = vmatprep.subr.mxu0 0.0
    %89 = vmatpush1.msra.mxu0 0.0
    %90 = vmatprep.subr.mxu0 0.0
    %91 = vmatpush1.msra.mxu0 0.0
    %92 = vmatprep.subr.mxu0 0.0
    %93 = vmatpush1.msra.mxu0 0.0
    %94 = vmatprep.subr.mxu0 0.0
    %95 = vmatpush1.msra.mxu0 0.0
    %96 = vmatprep.subr.mxu0 0.0
    %97 = vmatpush1.msra.mxu0 0.0
    %98 = vmatprep.subr.mxu0 0.0
    %99 = vmatpush1.msra.mxu0 0.0
    %100 = vmatprep.subr.mxu0 0.0
    %101 = vmatpush1.msra.mxu0 0.0
    %102 = vmatprep.subr.mxu0 0.0
    %103 = vmatpush1.msra.mxu0 0.0
    %104 = vmatprep.subr.mxu0 0.0
    %105 = vmatpush1.msra.mxu0 0.0
    %106 = vmatprep.subr.mxu0 0.0
    %107 = vmatpush1.msra.mxu0 0.0
    %108 = vmatprep.mubr.f32.mxu0 0.0
    %109 = vmatmul.mubr.f32.gmra.mrb[0].mxu0 %v29
    %v110 = vpop.f32.mrb[0].mxu0
    %v111 = vadd.f32 0.0, %v110
    %v112 = vpop.f32.mrb[0].mxu0
    %113 = vmatprep.mubr.f32.mxu0 0.0
    %114 = vmatmul.mubr.f32.gmra.mrb[0].mxu0 %v32
    %v115 = vpop.f32.mrb[0].mxu0
    %v116 = vadd.f32 0.0, %v115
    %v117 = vpop.f32.mrb[0].mxu0
    %118 = vmatprep.mubr.f32.mxu0 0.0
    %119 = vmatmul.mubr.f32.gmra.mrb[0].mxu0 %v35
    %v120 = vpop.f32.mrb[0].mxu0
    %v121 = vadd.f32 0.0, %v120
    %v122 = vpop.f32.mrb[0].mxu0
    %123 = vmatprep.mubr.f32.mxu0 0.0
    %124 = vmatmul.mubr.f32.gmra.mrb[0].mxu0 %v38
    %v125 = vpop.f32.mrb[0].mxu0
    %v126 = vadd.f32 0.0, %v125
    %v127 = vpop.f32.mrb[0].mxu0
    %128 = vdwg.mxu0
    %v129 = vlaneseq
    %v130 = vshrl.u32 %v129, 7
    %v131 = vadd.s32 %v130, 8
    %v132 = vadd.s32 %v130, 16
    %v133 = vadd.s32 %v130, 24
    %vm134 = vcmp.ge.s32.totalorder %v130, 0
    %vm135 = vcmp.ge.s32.totalorder %v131, 0
    %vm136 = vcmp.ge.s32.totalorder %v132, 0
    %vm137 = vcmp.ge.s32.totalorder %v133, 0
    %vm138 = vcmp.lt.s32.totalorder %v130, 14
    %vm139 = vcmp.lt.s32.totalorder %v131, 14
    %vm140 = vcmp.lt.s32.totalorder %v132, 14
    %vm141 = vcmp.lt.s32.totalorder %v133, 14
    %vm142 = vmand %vm134, %vm138
    %vm143 = vmand %vm135, %vm139
    %vm144 = vmand %vm136, %vm140
    %vm145 = vmand %vm137, %vm141
    %v146 = vsel %vm142, %v111, -inf
    %v147 = vsel %vm143, %v116, -inf
    %v148 = vsel %vm144, %v121, -inf
    %v149 = vsel %vm145, %v126, -inf
    %vm150 = vcmask 261120
    %v151 = vsel %vm150, %v146, -inf
    %v152 = vsel %vm150, %v147, -inf
    %v153 = vsel %vm150, %v148, -inf
    %vm154 = vcmask 257024
    %v155 = vsel %vm154, %v149, -inf
    %v156 = vmax.f32 %v151, %v152
    %v157 = vmax.f32 %v153, %v155
    %v158 = vmax.f32 %v156, %v157
    %v159 = vrot.slane %v158, 4
    %v160 = vmax.f32 %v158, %v159
    %v161 = vrot.slane %v160, 2
    %v162 = vmax.f32 %v160, %v161
    %v163 = vrot.slane %v162, 1
    %v164 = vmax.f32 %v162, %v163
    %vm165 = vcmp.ge.s32.totalorder %v130, 14
    %vm166 = vcmp.ge.s32.totalorder %v131, 14
    %vm167 = vcmp.ge.s32.totalorder %v132, 14
    %vm168 = vcmp.ge.s32.totalorder %v133, 14
    %vm169 = vcmp.lt.s32.totalorder %v130, 28
    %vm170 = vcmp.lt.s32.totalorder %v131, 28
    %vm171 = vcmp.lt.s32.totalorder %v132, 28
    %vm172 = vcmp.lt.s32.totalorder %v133, 28
    %vm173 = vmand %vm165, %vm169
    %vm174 = vmand %vm166, %vm170
    %vm175 = vmand %vm167, %vm171
    %vm176 = vmand %vm168, %vm172
    %v177 = vsel %vm173, %v111, -inf
    %v178 = vsel %vm174, %v116, -inf
    %v179 = vsel %vm175, %v121, -inf
    %v180 = vsel %vm176, %v126, -inf
    %v181 = vsel %vm150, %v177, -inf
    %v182 = vsel %vm150, %v178, -inf
    %v183 = vsel %vm150, %v179, -inf
    %v184 = vsel %vm154, %v180, -inf
    %v185 = vmax.f32 %v181, %v182
    %v186 = vmax.f32 %v183, %v184
    %v187 = vmax.f32 %v185, %v186
    %v188 = vrot.slane %v187, 4
    %v189 = vmax.f32 %v187, %v188
    %v190 = vrot.slane %v189, 2
    %v191 = vmax.f32 %v189, %v190
    %v192 = vrot.slane %v191, 1
    %v193 = vmax.f32 %v191, %v192
    %vm194 = vcmask 1040384
    %v195 = vsel %vm194, %v164, %v193
    %v196 = vld [vmem:[%s2] sm:$0x1]
    %v198 = vlaneseq
    %v199 = vshrl.u32 %v198, 7
    %v200 = vsub.s32 0, %v199
    %v201 = vrot.slane %v196, %v200
    %v203 = vadd.f32 %v195, %v201
    %v204 = vmax.f32 %v203, 0.0
    %v205 = vld [vmem:[%s3] sm:$0xff]
    %v206 = vld [vmem:[%s3 + $0x8] sm:$0xff]
    %v207 = vld [vmem:[%s3 + $0x10] sm:$0xff]
    %v208 = vld [vmem:[%s3 + $0x18] sm:$0xff]
    %v209 = vld [vmem:[%s4] sm:$0x1]
    %v211 = vlaneseq
    %v212 = vshrl.u32 %v211, 7
    %v213 = vsub.s32 0, %v212
    %v214 = vrot.slane %v209, %v213
    %v217 = vsel %vm150, %v204, 0
    %219 = vmatprep.subr.mxu0 0.0
    %220 = vmatpush1.msra.mxu0 %v205
    %221 = vmatprep.subr.mxu0 0.0
    %222 = vmatpush1.msra.mxu0 %v206
    %223 = vmatprep.subr.mxu0 0.0
    %224 = vmatpush1.msra.mxu0 %v207
    %225 = vmatprep.subr.mxu0 0.0
    %226 = vmatpush1.msra.mxu0 %v208
    %227 = vmatprep.subr.mxu0 0.0
    %228 = vmatpush1.msra.mxu0 0.0
    %229 = vmatprep.subr.mxu0 0.0
    %230 = vmatpush1.msra.mxu0 0.0
    %231 = vmatprep.subr.mxu0 0.0
    %232 = vmatpush1.msra.mxu0 0.0
    %233 = vmatprep.subr.mxu0 0.0
    %234 = vmatpush1.msra.mxu0 0.0
    %235 = vmatprep.subr.mxu0 0.0
    %236 = vmatpush1.msra.mxu0 0.0
    %237 = vmatprep.subr.mxu0 0.0
    %238 = vmatpush1.msra.mxu0 0.0
    %239 = vmatprep.subr.mxu0 0.0
    %240 = vmatpush1.msra.mxu0 0.0
    %241 = vmatprep.subr.mxu0 0.0
    %242 = vmatpush1.msra.mxu0 0.0
    %243 = vmatprep.subr.mxu0 0.0
    %244 = vmatpush1.msra.mxu0 0.0
    %245 = vmatprep.subr.mxu0 0.0
    %246 = vmatpush1.msra.mxu0 0.0
    %247 = vmatprep.subr.mxu0 0.0
    %248 = vmatpush1.msra.mxu0 0.0
    %249 = vmatprep.subr.mxu0 0.0
    %250 = vmatpush1.msra.mxu0 0.0
    %251 = vmatprep.subr.mxu0 0.0
    %252 = vmatpush1.msra.mxu0 0.0
    %253 = vmatprep.subr.mxu0 0.0
    %254 = vmatpush1.msra.mxu0 0.0
    %255 = vmatprep.subr.mxu0 0.0
    %256 = vmatpush1.msra.mxu0 0.0
    %257 = vmatprep.subr.mxu0 0.0
    %258 = vmatpush1.msra.mxu0 0.0
    %259 = vmatprep.subr.mxu0 0.0
    %260 = vmatpush1.msra.mxu0 0.0
    %261 = vmatprep.subr.mxu0 0.0
    %262 = vmatpush1.msra.mxu0 0.0
    %263 = vmatprep.subr.mxu0 0.0
    %264 = vmatpush1.msra.mxu0 0.0
    %265 = vmatprep.subr.mxu0 0.0
    %266 = vmatpush1.msra.mxu0 0.0
    %267 = vmatprep.subr.mxu0 0.0
    %268 = vmatpush1.msra.mxu0 0.0
    %269 = vmatprep.subr.mxu0 0.0
    %270 = vmatpush1.msra.mxu0 0.0
    %271 = vmatprep.subr.mxu0 0.0
    %272 = vmatpush1.msra.mxu0 0.0
    %273 = vmatprep.subr.mxu0 0.0
    %274 = vmatpush1.msra.mxu0 0.0
    %275 = vmatprep.subr.mxu0 0.0
    %276 = vmatpush1.msra.mxu0 0.0
    %277 = vmatprep.subr.mxu0 0.0
    %278 = vmatpush1.msra.mxu0 0.0
    %279 = vmatprep.subr.mxu0 0.0
    %280 = vmatpush1.msra.mxu0 0.0
    %281 = vmatprep.subr.mxu0 0.0
    %282 = vmatpush1.msra.mxu0 0.0
    %283 = vmatprep.mubr.f32.mxu0 0.0
    %284 = vmatmul.mubr.f32.gmra.mrb[0].mxu0 %v217
    %v285 = vpop.f32.mrb[0].mxu0
    %v286 = vadd.f32 %v214, %v285
    %v287 = vpop.f32.mrb[0].mxu0
    %288 = vdwg.mxu0
    %vm289 = vcmask 58368
    %290 = vst.msk [vmem:[#allocation2] sm:$0x3] %vm289, %v286
    // Predicated region
    $region22: #{tpu_custom_call.1} parent=1 // pred_check
      _
    $region23: #{tpu_custom_call.1} parent=1 // pred_check_branch
      %292 = sbr.rel (0) target = $region25
    $region24: #{tpu_custom_call.1} parent=1 // pred_region
      %s294 = ssub.s32 32, 32
      %295 = vsyncadd [#allocation3], %s294
      %s297 = sshll.u32 [#allocation2], 4
      %s298 = int_to_ptr.vmem [resolvable:$true] %s297
      %300 = dma.vmem_to_hbm [thread:$0]  %s298, 32, %s5, [#allocation3]
    $region25: #{tpu_custom_call.1} parent=1 // pred_fallthru
      _
    // Predicated region
    $region26: #{tpu_custom_call.1} parent=1 // pred_check
      _
    $region27: #{tpu_custom_call.1} parent=1 // pred_check_branch
      %302 = sbr.rel (0) target = $region29
    $region28: #{tpu_custom_call.1} parent=1 // pred_region
      %303 = dma.done [#allocation3], 32
    $region29: #{tpu_custom_call.1} parent=1 // pred_fallthru
      _
    %304 = vsyncpa [#allocation3], 1

</llo_original>
